<compile_context>
chip_gen: v6e
topology: v6e:2x2x1
jax: 0.10.0
libtpu: 0.0.40
codegen_flags: <defaults>
</compile_context>

<pallas_src>
import math

import jax
import jax.numpy as jnp
import numpy as np
from jax.experimental import pallas as pl
from jax.experimental.pallas import tpu as pltpu

# ---- module hyper-parameters (small, consistent with the module __init__) ----
TOKEN_NUM = 8        # token_num (learnable query tokens)
D_MODEL = 64         # d_model
K_MODEL = 32         # k_model (feature dim of input x)
NUM_HEADS = 8        # num_heads (module default)
HEAD_DIM = D_MODEL // NUM_HEADS


def _round_up(n, m):
    return ((n + m - 1) // m) * m


def _token_resampler_kernel(x_ref, w_ref, b_ref, out_ref):
    """Processes a tile of Nb flattened (b*t) rows.

    x_ref   : (Nb, K)        one kv vector per row
    w_ref   : (K, D)         folded Wv @ Wo   (grid-invariant, stays resident)
    b_ref   : (1, D)         folded bv @ Wo + bo
    out_ref : (Nb, S*D)      lane-dense output; each row replicated over S tokens
    """
    # Single MXU matmul with f32 accumulation; one bias add per tile.
    rows = jnp.dot(x_ref[...], w_ref[...],
                   preferred_element_type=jnp.float32) + b_ref[...]   # (Nb, D)
    # kv_len == 1  =>  attention weights are exactly 1.0  =>  every token gets
    # the same value.  Replicate along the lane axis so the store is a full
    # 512-lane unmasked vst (no (Nb, S, D) reshape / masked partial stores).
    out_ref[...] = jnp.tile(rows, (1, TOKEN_NUM)).astype(out_ref.dtype)


def token_resampler(x, params, *, block_rows=1024):
    """x: (B, T, K_MODEL) -> (B, T, TOKEN_NUM, D_MODEL)."""
    B, T, K = x.shape
    assert K == K_MODEL
    S, D = TOKEN_NUM, D_MODEL
    N = B * T

    # Host-side algebraic fold (exact for the module's kv_len == 1 path).
    w_fold = jnp.dot(params["wv"], params["wo"])                  # (K, D)
    b_fold = jnp.dot(params["bv"], params["wo"]) + params["bo"]   # (1, D)

    # Row tiling: sublane-aligned (multiple of 8); pad N so the grid divides
    # evenly.  block_rows=1024 keeps double-buffered tiles at
    # in 2x128 KiB + out 2x2 MiB — inside the default scoped VMEM on
    # v5e (16 MiB) / v6e (32 MiB) / v7x (32 MiB), no vmem flag needed.
    block_rows = max(8, min(block_rows, _round_up(N, 8)))
    block_rows = _round_up(block_rows, 8)
    n_pad = _round_up(N, block_rows)

    x_flat = x.reshape(N, K)
    if n_pad != N:
        x_flat = jnp.pad(x_flat, ((0, n_pad - N), (0, 0)))

    out = pl.pallas_call(
        _token_resampler_kernel,
        out_shape=jax.ShapeDtypeStruct((n_pad, S * D), jnp.float32),
        grid=(n_pad // block_rows,),
        in_specs=[
            pl.BlockSpec((block_rows, K), lambda i: (i, 0)),   # x rows (tiled)
            pl.BlockSpec((K, D), lambda i: (0, 0)),            # folded weight
            pl.BlockSpec((1, D), lambda i: (0, 0)),            # folded bias
        ],
        out_specs=pl.BlockSpec((block_rows, S * D), lambda i: (i, 0)),
        compiler_params=pltpu.CompilerParams(
            dimension_semantics=("parallel",)),
    )(x_flat, w_fold, b_fold)

    # Lane-dense (N, S*D) -> (B, T, S, D) to match rearrange('(b t) s d -> b t s d').
    return out[:N].reshape(B, T, S, D)


def init_params(key):
    """Deterministic synthetic parameters matching the module's shapes."""
    ks = jax.random.split(key, 9)

    def linear(kw, kb, fan_in, fan_out):
        bound = 1.0 / math.sqrt(fan_in)
        w = jax.random.uniform(kw, (fan_in, fan_out), jnp.float32, -bound, bound)
        b = jax.random.uniform(kb, (1, fan_out), jnp.float32, -bound, bound)
        return w, b

    tokens = 0.01 * jax.random.normal(ks[0], (TOKEN_NUM, D_MODEL), jnp.float32)
    wq, bq = linear(ks[1], ks[2], D_MODEL, D_MODEL)
    wk, bk = linear(ks[3], ks[4], K_MODEL, D_MODEL)
    wv, bv = linear(ks[5], ks[6], K_MODEL, D_MODEL)
    wo, bo = linear(ks[7], ks[8], D_MODEL, D_MODEL)
    return dict(tokens=tokens, wq=wq, bq=bq, wk=wk, bk=bk,
                wv=wv, bv=bv, wo=wo, bo=bo)


def reference(x, p):
    """Pure-JAX mirror of the PyTorch forward (full attention path)."""
    B, T, K = x.shape
    N = B * T
    S, D, H, hd = TOKEN_NUM, D_MODEL, NUM_HEADS, HEAD_DIM
    xf = x.reshape(N, 1, K)
    tok = jnp.broadcast_to(p["tokens"][None], (N, S, D))
    q = tok @ p["wq"] + p["bq"]
    k = xf @ p["wk"] + p["bk"]
    v = xf @ p["wv"] + p["bv"]
    qh = q.reshape(N, S, H, hd).transpose(0, 2, 1, 3)
    kh = k.reshape(N, 1, H, hd).transpose(0, 2, 1, 3)
    vh = v.reshape(N, 1, H, hd).transpose(0, 2, 1, 3)
    scores = jnp.einsum("nhsd,nhkd->nhsk", qh, kh) / math.sqrt(hd)
    attn = jax.nn.softmax(scores, axis=-1)
    oh = jnp.einsum("nhsk,nhkd->nhsd", attn, vh)
    o = oh.transpose(0, 2, 1, 3).reshape(N, S, D)
    out = o @ p["wo"] + p["bo"]
    return out.reshape(B, T, S, D)


if __name__ == "__main__":
    key = jax.random.PRNGKey(0)
    kx, kp = jax.random.split(key)
    B, T = 2, 8
    x = jax.random.normal(kx, (B, T, K_MODEL), jnp.float32)
    params = init_params(kp)

    out = token_resampler(x, params)
    out = jax.block_until_ready(out)

    ref = reference(x, params)
    assert out.shape == (B, T, TOKEN_NUM, D_MODEL)
    np.testing.assert_allclose(np.asarray(out), np.asarray(ref),
                               rtol=1e-4, atol=1e-4)
    print("KERNEL_OK")
</pallas_src>

<mosaic_0001>
module attributes {stable_mosaic.version = 11 : i64} {
  func.func @_token_resampler_kernel(%arg0: i32, %arg1: memref<16x32xf32, #tpu.memory_space<vmem>>, %arg2: memref<32x64xf32, #tpu.memory_space<vmem>>, %arg3: memref<1x64xf32, #tpu.memory_space<vmem>>, %arg4: memref<16x512xf32, #tpu.memory_space<vmem>>) attributes {dimension_semantics = [#tpu.dimension_semantics<parallel>], iteration_bounds = array<i64: 1>, scalar_prefetch = 0 : i64, scratch_operands = 0 : i64, tpu.core_type = #tpu.core_type<tc>, window_params = [{transform_indices = @transform_0, window_bounds = array<i64: 16, 32>}, {pipeline_mode = #tpu.pipeline_mode<synchronous>, transform_indices = @transform_1, window_bounds = array<i64: 32, 64>}, {pipeline_mode = #tpu.pipeline_mode<synchronous>, transform_indices = @transform_2, window_bounds = array<i64: 1, 64>}, {transform_indices = @transform_3, window_bounds = array<i64: 16, 512>}]} {
    %c0 = arith.constant 0 : index
    %c0_0 = arith.constant 0 : index
    %0 = vector.load %arg1[%c0, %c0_0] : memref<16x32xf32, #tpu.memory_space<vmem>>, vector<16x32xf32>
    %c0_1 = arith.constant 0 : index
    %c0_2 = arith.constant 0 : index
    %1 = vector.load %arg2[%c0_1, %c0_2] : memref<32x64xf32, #tpu.memory_space<vmem>>, vector<32x64xf32>
    %cst = arith.constant dense<0.000000e+00> : vector<16x64xf32>
    %2 = tpu.matmul %0, %1, %cst {dimension_numbers = #tpu.dot_dimension_numbers<[1], [0], [0], [1], [0, 0, 1, 1], [], []>} : vector<16x32xf32>, vector<32x64xf32>, vector<16x64xf32> -> vector<16x64xf32>
    %c0_3 = arith.constant 0 : index
    %c0_4 = arith.constant 0 : index
    %3 = vector.load %arg3[%c0_3, %c0_4] : memref<1x64xf32, #tpu.memory_space<vmem>>, vector<1x64xf32>
    %4 = vector.broadcast %3 : vector<1x64xf32> to vector<16x64xf32>
    %5 = arith.addf %2, %4 : vector<16x64xf32>
    %6 = tpu.concatenate %5, %5, %5, %5, %5, %5, %5, %5 in 1 : vector<16x64xf32>, vector<16x64xf32>, vector<16x64xf32>, vector<16x64xf32>, vector<16x64xf32>, vector<16x64xf32>, vector<16x64xf32>, vector<16x64xf32> -> vector<16x512xf32>
    %c0_5 = arith.constant 0 : index
    %c0_6 = arith.constant 0 : index
    %7 = vector.load %arg4[%c0_5, %c0_6] : memref<16x512xf32, #tpu.memory_space<vmem>>, vector<16x512xf32>
    tpu.vector_store %arg4[%c0_5, %c0_6], %6 {strides = array<i32>} : memref<16x512xf32, #tpu.memory_space<vmem>>, vector<16x512xf32>,
    return
  }
  func.func @transform_0(%arg0: i32) -> (i32, i32) {
    %c0_i32 = arith.constant 0 : i32
    %c0_i32_0 = arith.constant 0 : i32
    return %arg0, %c0_i32 : i32, i32
  }
  func.func @transform_1(%arg0: i32) -> (i32, i32) {
    %c0_i32 = arith.constant 0 : i32
    %c0_i32_0 = arith.constant 0 : i32
    %c0_i32_1 = arith.constant 0 : i32
    return %c0_i32, %c0_i32_0 : i32, i32
  }
  func.func @transform_2(%arg0: i32) -> (i32, i32) {
    %c0_i32 = arith.constant 0 : i32
    %c0_i32_0 = arith.constant 0 : i32
    %c0_i32_1 = arith.constant 0 : i32
    return %c0_i32, %c0_i32_0 : i32, i32
  }
  func.func @transform_3(%arg0: i32) -> (i32, i32) {
    %c0_i32 = arith.constant 0 : i32
    %c0_i32_0 = arith.constant 0 : i32
    return %arg0, %c0_i32 : i32, i32
  }
}

</mosaic_0001>

<llo_original>
// kernel: tpu_custom_call.1
$region0: #{tpu_custom_call.1}
  #allocation0 [shape = 'u32[]', space=smem, size = 0x4, offset = 0x4, fixed_abs, tag = 'smem constant byte address 0x4 - core index']
  #allocation1 [shape = 'u32[144,128]{1,0:T(1,128)}', space=vmem, size = 0x12000, scoped, tag = 'internal scratch']
  %s0 = inlined_call_operand.hbm [shape: f32[16,32], index: 0, kind: input, shape index: {}]
  %s1 = inlined_call_operand.hbm [shape: f32[32,64], index: 1, kind: input, shape index: {}]
  %s2 = inlined_call_operand.vmem [shape: f32[1,64], index: 2, kind: input, shape index: {}]
  %s3 = inlined_call_operand.hbm [shape: f32[16,512], index: 3, kind: output, shape index: {}]
  %s4 = sld [smem:[#allocation0]]
  $region30: #{tpu_custom_call.1} parent=0
    _
  %s6 = ssub.s32 1, %s4
  %s7 = scalar_select 0, %s6, %s4
  $region1: #{tpu_custom_call.1} parent=0
    #allocation2 [shape = 'u8[8192]{0}', space=vmem, size = 0x2000, scoped, tag = 'input window, operand 0, single buffered']
    #allocation3 [shape = 's32[1]{0}', space=sflag, size = 0x4, scoped, tag = 'scoped memory for tpu_custom_call.1']
    #allocation4 [shape = 's32[1]{0}', space=sflag, size = 0x4, scoped, tag = 'scoped memory for tpu_custom_call.1']
    #allocation5 [shape = 'u8[16384]{0}', space=vmem, size = 0x4000, scoped, tag = 'input window, operand 1, single buffered']
    #allocation6 [shape = 's32[1]{0}', space=sflag, size = 0x4, scoped, tag = 'scoped memory for tpu_custom_call.1']
    #allocation7 [shape = 'u8[32768]{0}', space=vmem, size = 0x8000, scoped, tag = 'output window, operand 0, single buffered']
    %8 = vsyncpa [#allocation3], 0
    %9 = vsyncpa [#allocation6], 0
    %10 = vsyncpa [#allocation4], 0
    // Predicated region
    $region2: #{tpu_custom_call.1} parent=1 // pred_check
      _
    $region3: #{tpu_custom_call.1} parent=1 // pred_check_branch
      %12 = sbr.rel (0) target = $region5
    $region4: #{tpu_custom_call.1} parent=1 // pred_region
      %s14 = ssub.s32 256, 256
      %15 = vsyncadd [#allocation3], %s14
      %s16 = sshll.u32 [#allocation2], 4
      %s17 = int_to_ptr.vmem [resolvable:$true] %s16
      %22 = dma.hbm_to_vmem [thread:$0]  %s0, 256, %s17, [#allocation3], 128, 128, 8
    $region5: #{tpu_custom_call.1} parent=1 // pred_fallthru
      _
    // Predicated region
    $region6: #{tpu_custom_call.1} parent=1 // pred_check
      _
    $region7: #{tpu_custom_call.1} parent=1 // pred_check_branch
      %24 = sbr.rel (0) target = $region9
    $region8: #{tpu_custom_call.1} parent=1 // pred_region
      %s26 = ssub.s32 512, 512
      %27 = vsyncadd [#allocation6], %s26
      %s28 = sshll.u32 [#allocation5], 4
      %s29 = int_to_ptr.vmem [resolvable:$true] %s28
      %34 = dma.hbm_to_vmem [thread:$0]  %s1, 512, %s29, [#allocation6], 128, 128, 8
    $region9: #{tpu_custom_call.1} parent=1 // pred_fallthru
      _
    // Predicated region
    $region10: #{tpu_custom_call.1} parent=1 // pred_check
      _
    $region11: #{tpu_custom_call.1} parent=1 // pred_check_branch
      %36 = sbr.rel (0) target = $region13
    $region12: #{tpu_custom_call.1} parent=1 // pred_region
      _
    $region13: #{tpu_custom_call.1} parent=1 // pred_fallthru
      _
    // Predicated region
    $region14: #{tpu_custom_call.1} parent=1 // pred_check
      _
    $region15: #{tpu_custom_call.1} parent=1 // pred_check_branch
      %38 = sbr.rel (0) target = $region17
    $region16: #{tpu_custom_call.1} parent=1 // pred_region
      %39 = dma.done [#allocation3], 256
    $region17: #{tpu_custom_call.1} parent=1 // pred_fallthru
      _
    // Predicated region
    $region18: #{tpu_custom_call.1} parent=1 // pred_check
      _
    $region19: #{tpu_custom_call.1} parent=1 // pred_check_branch
      %41 = sbr.rel (0) target = $region21
    $region20: #{tpu_custom_call.1} parent=1 // pred_region
      %42 = dma.done [#allocation6], 512
    $region21: #{tpu_custom_call.1} parent=1 // pred_fallthru
      _
    %v43 = vld [vmem:[#allocation2] sm:$0xff]
    %v44 = vld [vmem:[#allocation2 + $0x8] sm:$0xff]
    %v45 = vld [vmem:[#allocation5] sm:$0xff]
    %v46 = vld [vmem:[#allocation5 + $0x8] sm:$0xff]
    %v47 = vld [vmem:[#allocation5 + $0x10] sm:$0xff]
    %v48 = vld [vmem:[#allocation5 + $0x18] sm:$0xff]
    %v49 = vld [vmem:[%s2] sm:$0x1]
    %v51 = vlaneseq
    %v52 = vshrl.u32 %v51, 7
    %v53 = vsub.s32 0, %v52
    %v54 = vrot.slane %v49, %v53
    %vm56 = vcmask 261120
    %v58 = vsel %vm56, %v43, 0
    %v61 = vsel %vm56, %v44, 0
    %63 = vmatprep.subr.mxu0 0.0
    %64 = vmatpush1.msra.mxu0 0.0
    %65 = vmatprep.subr.mxu0 0.0
    %66 = vmatpush1.msra.mxu0 0.0
    %67 = vmatprep.subr.mxu0 0.0
    %68 = vmatpush1.msra.mxu0 0.0
    %69 = vmatprep.subr.mxu0 0.0
    %70 = vmatpush1.msra.mxu0 0.0
    %71 = vmatprep.subr.mxu0 0.0
    %72 = vmatpush1.msra.mxu0 0.0
    %73 = vmatprep.subr.mxu0 0.0
    %74 = vmatpush1.msra.mxu0 0.0
    %75 = vmatprep.subr.mxu0 0.0
    %76 = vmatpush1.msra.mxu0 0.0
    %77 = vmatprep.subr.mxu0 0.0
    %78 = vmatpush1.msra.mxu0 0.0
    %79 = vmatprep.subr.mxu0 0.0
    %80 = vmatpush1.msra.mxu0 0.0
    %81 = vmatprep.subr.mxu0 0.0
    %82 = vmatpush1.msra.mxu0 0.0
    %83 = vmatprep.subr.mxu0 0.0
    %84 = vmatpush1.msra.mxu0 0.0
    %85 = vmatprep.subr.mxu0 0.0
    %86 = vmatpush1.msra.mxu0 0.0
    %87 = vmatprep.subr.mxu0 0.0
    %88 = vmatpush1.msra.mxu0 %v48
    %89 = vmatprep.subr.mxu0 0.0
    %90 = vmatpush1.msra.mxu0 %v47
    %91 = vmatprep.subr.mxu0 0.0
    %92 = vmatpush1.msra.mxu0 %v46
    %93 = vmatprep.subr.mxu0 0.0
    %94 = vmatpush1.msra.mxu0 %v45
    %95 = vmatprep.subr.mxu0 0.0
    %96 = vmatpush2.msra.mxu0 0.0
    %97 = vmatprep.subr.mxu0 0.0
    %98 = vmatpush2.msra.mxu0 0.0
    %99 = vmatprep.subr.mxu0 0.0
    %100 = vmatpush2.msra.mxu0 0.0
    %101 = vmatprep.subr.mxu0 0.0
    %102 = vmatpush2.msra.mxu0 0.0
    %103 = vmatprep.subr.mxu0 0.0
    %104 = vmatpush2.msra.mxu0 0.0
    %105 = vmatprep.subr.mxu0 0.0
    %106 = vmatpush2.msra.mxu0 0.0
    %107 = vmatprep.subr.mxu0 0.0
    %108 = vmatpush2.msra.mxu0 0.0
    %109 = vmatprep.subr.mxu0 0.0
    %110 = vmatpush2.msra.mxu0 0.0
    %111 = vmatprep.subr.mxu0 0.0
    %112 = vmatpush2.msra.mxu0 0.0
    %113 = vmatprep.subr.mxu0 0.0
    %114 = vmatpush2.msra.mxu0 0.0
    %115 = vmatprep.subr.mxu0 0.0
    %116 = vmatpush2.msra.mxu0 0.0
    %117 = vmatprep.subr.mxu0 0.0
    %118 = vmatpush2.msra.mxu0 0.0
    %119 = vmatprep.subr.mxu0 0.0
    %120 = vmatpush2.msra.mxu0 0.0
    %121 = vmatprep.subr.mxu0 0.0
    %122 = vmatpush2.msra.mxu0 0.0
    %123 = vmatprep.subr.mxu0 0.0
    %124 = vmatpush2.msra.mxu0 0.0
    %125 = vmatprep.subr.mxu0 0.0
    %126 = vmatpush2.msra.mxu0 0.0
    %127 = vmatprep.mubr.f32.mxu0 0.0
    %128 = vmatmul.mubr.f32.gmra.mxu0 %v58
    %v129 = vpop.f32.mrf.mxu0
    %v130 = vadd.f32 %v54, %v129
    %v131 = vpop.f32.mrf.mxu0
    %132 = vmatprep.mubr.f32.mxu0 0.0
    %133 = vmatmul.mubr.f32.gmra.mxu0 %v61
    %v134 = vpop.f32.mrf.mxu0
    %v135 = vadd.f32 %v54, %v134
    %v136 = vpop.f32.mrf.mxu0
    %137 = vdwg.mxu0
    %140 = vrot.lane.b32.xlu0 %v130, 64
    %v141 = vpop.permute.xlu0 %140
    %142 = vrot.lane.b32.xlu0 %v135, 64
    %v143 = vpop.permute.xlu0 %142
    %vm146 = vcmask 523264
    %v147 = vsel %vm146, %v130, %v141
    %v148 = vsel %vm146, %v135, %v143
    %149 = vst [vmem:[#allocation7] sm:$0xff] %v147
    %150 = vst [vmem:[#allocation7 + $0x8] sm:$0xff] %v147
    %151 = vst [vmem:[#allocation7 + $0x10] sm:$0xff] %v147
    %152 = vst [vmem:[#allocation7 + $0x18] sm:$0xff] %v147
    %153 = vst [vmem:[#allocation7 + $0x20] sm:$0xff] %v148
    %154 = vst [vmem:[#allocation7 + $0x28] sm:$0xff] %v148
    %155 = vst [vmem:[#allocation7 + $0x30] sm:$0xff] %v148
    %156 = vst [vmem:[#allocation7 + $0x38] sm:$0xff] %v148
    // Predicated region
    $region22: #{tpu_custom_call.1} parent=1 // pred_check
      _
    $region23: #{tpu_custom_call.1} parent=1 // pred_check_branch
      %158 = sbr.rel (0) target = $region25
    $region24: #{tpu_custom_call.1} parent=1 // pred_region
      %s160 = ssub.s32 1024, 1024
      %161 = vsyncadd [#allocation4], %s160
      %s162 = sshll.u32 [#allocation7], 4
      %s163 = int_to_ptr.vmem [resolvable:$true] %s162
      %168 = dma.vmem_to_hbm [thread:$0]  %s163, 1024, %s3, [#allocation4], 512, 512, 32
    $region25: #{tpu_custom_call.1} parent=1 // pred_fallthru
      _
    // Predicated region
    $region26: #{tpu_custom_call.1} parent=1 // pred_check
      _
    $region27: #{tpu_custom_call.1} parent=1 // pred_check_branch
      %170 = sbr.rel (0) target = $region29
    $region28: #{tpu_custom_call.1} parent=1 // pred_region
      %171 = dma.done [#allocation4], 1024
    $region29: #{tpu_custom_call.1} parent=1 // pred_fallthru
      _
    %172 = vsyncpa [#allocation3], 1
    %173 = vsyncpa [#allocation6], 1
    %174 = vsyncpa [#allocation4], 1

</llo_original>
